<compile_context>
chip_gen: v5e
topology: v5e:2x2
jax: 0.10.0
libtpu: 0.0.40
codegen_flags: <defaults>
</compile_context>

<pallas_src>
import functools
import math

import jax
import jax.numpy as jnp
from jax.experimental import pallas as pl
from jax.experimental.pallas import tpu as pltpu


# --------------------------------------------------------------------------- #
# Kernels
# --------------------------------------------------------------------------- #
def _attention_kernel_full(key_ref, value_ref, query_ref, out_ref, attn_ref, *, scale):
    """Moderate-Tk path: softmax over the whole key axis in one shot."""
    # Block shapes:
    #   key/value: (bb, Tk, D)   -- resident across the q-tile grid axis
    #   query/out: (bb, tq, D)
    #   attn:      (bb, tq, Tk)
    q = query_ref[...] * scale          # fold 1/sqrt(d) into q (tq*D muls, not tq*Tk)
    k = key_ref[...]
    v = value_ref[...]

    # scores[b,i,j] = sum_d q[b,i,d] * k[b,j,d] — contract on D of both operands
    # directly (no explicit k.T / XLU transpose).
    scores = jnp.einsum("bqd,bkd->bqk", q, k,
                        preferred_element_type=jnp.float32)        # (bb, tq, Tk) f32

    m = jnp.max(scores, axis=-1, keepdims=True)
    e = jnp.exp(scores - m)
    denom = jnp.sum(e, axis=-1, keepdims=True)                     # (bb, tq, 1)
    # Exact reciprocal on the thin column (negligible cost); approx=True previously
    # made the user-visible attention rows not sum to 1.
    inv = 1.0 / denom
    attn = e * inv                                                 # broadcast multiply

    result = jnp.einsum("bqk,bkd->bqd", attn.astype(v.dtype), v,
                        preferred_element_type=jnp.float32)        # (bb, tq, D) f32

    out_ref[...] = result.astype(out_ref.dtype)
    attn_ref[...] = attn.astype(attn_ref.dtype)


def _attention_kernel_chunked(key_ref, value_ref, query_ref, out_ref, attn_ref,
                              *, scale, tk_chunk):
    """Long-Tk path: online softmax over Tk chunks.

    Unnormalized exp() chunks are written straight into the resident attn block;
    a single final pass applies the per-chunk running-max correction and the 1/l
    normalization.  f32 scores/exp temporaries are only (bb, tq, tk_chunk)."""
    bb, tq, Tk = attn_ref.shape
    D = query_ref.shape[-1]
    n_chunks = Tk // tk_chunk

    q = query_ref[...] * scale

    m = jnp.full((bb, tq, 1), -jnp.inf, dtype=jnp.float32)
    l = jnp.zeros((bb, tq, 1), dtype=jnp.float32)
    acc = jnp.zeros((bb, tq, D), dtype=jnp.float32)
    m_hist = []

    # Static unroll (chunk count bounded by _pick_k_chunk) — slices stay static,
    # so there is no dynamic indexing along the lane (Tk) dimension.
    for j in range(n_chunks):
        sl = slice(j * tk_chunk, (j + 1) * tk_chunk)
        k_j = key_ref[:, sl, :]
        v_j = value_ref[:, sl, :]
        s = jnp.einsum("bqd,bkd->bqk", q, k_j,
                       preferred_element_type=jnp.float32)          # (bb, tq, tk_chunk)
        m_new = jnp.maximum(m, jnp.max(s, axis=-1, keepdims=True))
        alpha = jnp.exp(m - m_new)                                  # rescale running stats
        p = jnp.exp(s - m_new)
        attn_ref[:, :, sl] = p.astype(attn_ref.dtype)               # unnormalized; fixed below
        l = alpha * l + jnp.sum(p, axis=-1, keepdims=True)
        acc = alpha * acc + jnp.einsum("bqk,bkd->bqd", p.astype(v_j.dtype), v_j,
                                       preferred_element_type=jnp.float32)
        m = m_new
        m_hist.append(m_new)

    inv_l = 1.0 / l                                                 # exact, thin column
    out_ref[...] = (acc * inv_l).astype(out_ref.dtype)
    # One normalization pass over the resident attn block: chunk j was written
    # relative to its own running max m_j, so fold exp(m_j - m_final) into 1/l.
    for j in range(n_chunks):
        sl = slice(j * tk_chunk, (j + 1) * tk_chunk)
        corr = jnp.exp(m_hist[j] - m) * inv_l
        attn_ref[:, :, sl] = (attn_ref[:, :, sl].astype(jnp.float32) * corr
                              ).astype(attn_ref.dtype)


# --------------------------------------------------------------------------- #
# Tiling / dispatch helpers
# --------------------------------------------------------------------------- #
def _pick_q_tile(Tq):
    # 128 is MXU-aligned on every generation; 256 buys nothing on v5e's 128-wide
    # MXU and overshoots v7x's 64 MiB VMEM for long Tk (perf review).
    if Tq >= 128 and Tq % 128 == 0:
        return 128
    return Tq


def _pick_batch_block(B, Tq, Tk, D):
    # Merge tiny per-batch problems into one grid step (amortizes ~0.35us/step),
    # keeping >= 2 grid steps so megacore still has parallel work.
    if Tq * Tk >= 128 * 128 or Tq * D >= 128 * 128:
        return 1
    for bb in (8, 4, 2):
        if B % bb == 0 and (B // bb) >= 2:
            return bb
    return 1


def _pick_k_chunk(Tk):
    # Use the online-softmax (chunked) kernel only for long, lane-aligned Tk.
    if Tk <= 512 or Tk % 128 != 0:
        return None
    tk = 512 if Tk % 512 == 0 else (256 if Tk % 256 == 0 else 128)
    # Bound the static unroll of the in-kernel chunk loop.
    while Tk // tk > 16 and Tk % (tk * 2) == 0:
        tk *= 2
    return tk


def _vmem_capacity_bytes():
    # Physical per-core VMEM (v5e/v6e: 128 MiB, v7x: 64 MiB). Conservative v7x
    # fallback if the query is unavailable (e.g. interpret mode off-TPU).
    try:
        return int(pltpu.get_tpu_info().vmem_capacity_bytes)
    except Exception:
        return 64 << 20


def _reference(key, value, query, num_hidden_k):
    attn = jnp.einsum("bqd,bkd->bqk", query, key) / math.sqrt(num_hidden_k)
    attn = jax.nn.softmax(attn, axis=-1)
    result = jnp.einsum("bqk,bkd->bqd", attn, value)
    return result, attn


# --------------------------------------------------------------------------- #
# Public wrapper
# --------------------------------------------------------------------------- #
def multihead_attention(key, value, query, num_hidden_k, *, use_pallas=None):
    """Pallas equivalent of MultiheadAttention.forward(key, value, query).

    Returns (result, attn) exactly like the PyTorch module. ``use_pallas=None``
    auto-dispatches: tiny problems go to fused XLA, everything else to Pallas."""
    B, Tk, D = key.shape
    Bq, Tq, Dq = query.shape
    assert B == Bq and D == Dq and value.shape == (B, Tk, D)

    tiny = (Tq * Tk < 128 * 128) and (Tq * D < 128 * 128)
    if use_pallas is None:
        use_pallas = not tiny
    if not use_pallas:
        # Heavily padded MXU passes + masked stores + per-step overhead dominate
        # at these sizes; fused XLA wins on every TPU generation.
        return _reference(key, value, query, num_hidden_k)

    scale = 1.0 / math.sqrt(num_hidden_k)
    tq = _pick_q_tile(Tq)
    bb = _pick_batch_block(B, Tq, Tk, D)
    tk_chunk = _pick_k_chunk(Tk)
    assert B % bb == 0 and Tq % tq == 0
    grid = (B // bb, Tq // tq)

    out_dtype = query.dtype
    attn_dtype = query.dtype
    # TODO(synk): an optional bf16 cast of q/k/v (and attn) at this boundary would
    # halve the dominant HBM traffic, but changes numerics vs. the f32 module.
    # TODO(synk): an attn-less variant (callers that only need `result`) would remove
    # the dominant B*Tq*Tk writeback; the module API always returns attn.

    isz = jnp.dtype(key.dtype).itemsize
    osz = jnp.dtype(out_dtype).itemsize
    asz = jnp.dtype(attn_dtype).itemsize
    chunk = Tk if tk_chunk is None else tk_chunk
    vmem_est = (2 * (2 * bb * Tk * D * isz            # double-buffered K + V blocks
                     + bb * tq * D * (isz + osz)      # query + result blocks
                     + bb * tq * Tk * asz)            # attn block
                + 4 * bb * tq * chunk * 4             # scores / exp f32 temps
                + 3 * bb * tq * D * 4)                # scaled-q / acc f32 temps

    phys = _vmem_capacity_bytes()
    vmem_limit = None
    # Raise the scoped limit whenever the estimate exceeds the smallest per-gen
    # default (v5e: 16 MiB), but never past the chip's physical VMEM - headroom.
    if vmem_est > (16 << 20):
        vmem_limit = int(min(max(vmem_est * 1.25, 32 << 20), phys - (8 << 20)))

    if tk_chunk is None:
        kernel = functools.partial(_attention_kernel_full, scale=scale)
    else:
        kernel = functools.partial(_attention_kernel_chunked, scale=scale,
                                   tk_chunk=tk_chunk)

    cost = pl.CostEstimate(
        flops=4 * B * Tq * Tk * D,                     # two matmuls, 2 flops / MAC
        transcendentals=B * Tq * Tk + B * Tq,          # exp (+ thin-column recip)
        bytes_accessed=(key.nbytes + value.nbytes + query.nbytes
                        + B * Tq * D * osz + B * Tq * Tk * asz),
    )

    out_shapes = (
        jax.ShapeDtypeStruct((B, Tq, D), out_dtype),
        jax.ShapeDtypeStruct((B, Tq, Tk), attn_dtype),
    )

    return pl.pallas_call(
        kernel,
        out_shape=out_shapes,
        grid_spec=pltpu.PrefetchScalarGridSpec(
            num_scalar_prefetch=0,
            grid=grid,
            in_specs=[
                pl.BlockSpec((bb, Tk, D), lambda b, i: (b, 0, 0)),   # key (resident over i)
                pl.BlockSpec((bb, Tk, D), lambda b, i: (b, 0, 0)),   # value (resident over i)
                pl.BlockSpec((bb, tq, D), lambda b, i: (b, i, 0)),   # query
            ],
            out_specs=[
                pl.BlockSpec((bb, tq, D), lambda b, i: (b, i, 0)),   # result
                pl.BlockSpec((bb, tq, Tk), lambda b, i: (b, i, 0)),  # attn (lane-dense when Tk%128==0)
            ],
        ),
        compiler_params=pltpu.CompilerParams(
            dimension_semantics=("parallel", "parallel"),
            vmem_limit_bytes=vmem_limit,
        ),
        cost_estimate=cost,
    )(key, value, query)


# --------------------------------------------------------------------------- #
# Self-test
# --------------------------------------------------------------------------- #
if __name__ == "__main__":
    rng = jax.random.PRNGKey(0)

    def run_case(B, Tq, Tk, D, force=None):
        kk, kv, kq = jax.random.split(jax.random.fold_in(rng, Tq * 10007 + Tk), 3)
        key = jax.random.normal(kk, (B, Tk, D), dtype=jnp.float32)
        value = jax.random.normal(kv, (B, Tk, D), dtype=jnp.float32)
        query = jax.random.normal(kq, (B, Tq, D), dtype=jnp.float32)

        result, attn = multihead_attention(key, value, query, D, use_pallas=force)
        result = jax.block_until_ready(result)
        attn = jax.block_until_ready(attn)

        ref_result, ref_attn = _reference(key, value, query, D)
        assert jnp.allclose(jnp.sum(attn, axis=-1), 1.0, atol=1e-3), \
            f"attn rows must sum to 1 (shape {(B, Tq, Tk, D)})"
        assert jnp.allclose(result, ref_result, atol=2e-3, rtol=2e-3), \
            f"result mismatch (shape {(B, Tq, Tk, D)})"
        assert jnp.allclose(attn, ref_attn, atol=2e-3, rtol=2e-3), \
            f"attn mismatch (shape {(B, Tq, Tk, D)})"

    # Tiny shape from the module's typical use: auto-dispatch (XLA fast path).
    run_case(2, 8, 8, 32)
    # Same tiny shape forced through the Pallas kernel (full-Tk path, bb-merged grid).
    run_case(2, 8, 8, 32, force=True)
    # Lane-dense shape on the full-Tk Pallas kernel.
    run_case(2, 128, 256, 32)
    # Longer Tk exercising the in-kernel Tk-chunked (online-softmax) path.
    run_case(2, 128, 1024, 32)

    print("KERNEL_OK")
</pallas_src>

<mosaic_0001>
module attributes {stable_mosaic.version = 11 : i64} {
  func.func @_attention_kernel_full(%arg0: i32, %arg1: i32, %arg2: memref<1x8x32xf32, #tpu.memory_space<vmem>>, %arg3: memref<1x8x32xf32, #tpu.memory_space<vmem>>, %arg4: memref<1x8x32xf32, #tpu.memory_space<vmem>>, %arg5: memref<1x8x32xf32, #tpu.memory_space<vmem>>, %arg6: memref<1x8x8xf32, #tpu.memory_space<vmem>>) attributes {dimension_semantics = [#tpu.dimension_semantics<parallel>, #tpu.dimension_semantics<parallel>], iteration_bounds = array<i64: 2, 1>, scalar_prefetch = 0 : i64, scratch_operands = 0 : i64, tpu.core_type = #tpu.core_type<tc>, window_params = [{transform_indices = @transform_0, window_bounds = array<i64: 1, 8, 32>}, {transform_indices = @transform_1, window_bounds = array<i64: 1, 8, 32>}, {transform_indices = @transform_2, window_bounds = array<i64: 1, 8, 32>}, {transform_indices = @transform_3, window_bounds = array<i64: 1, 8, 32>}, {transform_indices = @transform_4, window_bounds = array<i64: 1, 8, 8>}]} {
    %c0 = arith.constant 0 : index
    %c0_0 = arith.constant 0 : index
    %c0_1 = arith.constant 0 : index
    %0 = vector.load %arg4[%c0, %c0_0, %c0_1] : memref<1x8x32xf32, #tpu.memory_space<vmem>>, vector<1x8x32xf32>
    %cst = arith.constant 0.176776692 : f32
    %1 = vector.broadcast %cst : f32 to vector<1x8x32xf32>
    %2 = arith.mulf %0, %1 : vector<1x8x32xf32>
    %c0_2 = arith.constant 0 : index
    %c0_3 = arith.constant 0 : index
    %c0_4 = arith.constant 0 : index
    %3 = vector.load %arg2[%c0_2, %c0_3, %c0_4] : memref<1x8x32xf32, #tpu.memory_space<vmem>>, vector<1x8x32xf32>
    %c0_5 = arith.constant 0 : index
    %c0_6 = arith.constant 0 : index
    %c0_7 = arith.constant 0 : index
    %4 = vector.load %arg3[%c0_5, %c0_6, %c0_7] : memref<1x8x32xf32, #tpu.memory_space<vmem>>, vector<1x8x32xf32>
    "tpu.trace_start"() <{level = 10 : i32, message = "bqd,bkd->bqk"}> : () -> ()
    %cst_8 = arith.constant dense<0.000000e+00> : vector<1x8x8xf32>
    %5 = tpu.matmul %2, %3, %cst_8 {dimension_numbers = #tpu.dot_dimension_numbers<[2], [2], [1], [1], [0, 0, 0, 1, 1, 1], [0], [0]>} : vector<1x8x32xf32>, vector<1x8x32xf32>, vector<1x8x8xf32> -> vector<1x8x8xf32>
    "tpu.trace_stop"() : () -> ()
    %cst_9 = arith.constant dense<0xFF800000> : vector<1x8xf32>
    %6 = vector.multi_reduction <maximumf>, %5, %cst_9 [2] : vector<1x8x8xf32> to vector<1x8xf32>
    %7 = vector.shape_cast %6 : vector<1x8xf32> to vector<1x8x1xf32>
    %8 = vector.broadcast %7 : vector<1x8x1xf32> to vector<1x8x8xf32>
    %9 = arith.subf %5, %8 : vector<1x8x8xf32>
    %10 = math.exp %9 : vector<1x8x8xf32>
    %cst_10 = arith.constant dense<0.000000e+00> : vector<1x8xf32>
    %11 = vector.multi_reduction <add>, %10, %cst_10 [2] : vector<1x8x8xf32> to vector<1x8xf32>
    %12 = vector.shape_cast %11 : vector<1x8xf32> to vector<1x8x1xf32>
    %cst_11 = arith.constant 1.000000e+00 : f32
    %13 = vector.broadcast %cst_11 : f32 to vector<1x8x1xf32>
    %14 = arith.divf %13, %12 : vector<1x8x1xf32>
    %15 = vector.broadcast %14 : vector<1x8x1xf32> to vector<1x8x8xf32>
    %16 = arith.mulf %10, %15 : vector<1x8x8xf32>
    "tpu.trace_start"() <{level = 10 : i32, message = "bqk,bkd->bqd"}> : () -> ()
    %cst_12 = arith.constant dense<0.000000e+00> : vector<1x8x32xf32>
    %17 = tpu.matmul %16, %4, %cst_12 {dimension_numbers = #tpu.dot_dimension_numbers<[2], [1], [1], [2], [0, 0, 0, 1, 1, 2], [0], [0]>} : vector<1x8x8xf32>, vector<1x8x32xf32>, vector<1x8x32xf32> -> vector<1x8x32xf32>
    "tpu.trace_stop"() : () -> ()
    %c0_13 = arith.constant 0 : index
    %c0_14 = arith.constant 0 : index
    %c0_15 = arith.constant 0 : index
    %18 = vector.load %arg5[%c0_13, %c0_14, %c0_15] : memref<1x8x32xf32, #tpu.memory_space<vmem>>, vector<1x8x32xf32>
    tpu.vector_store %arg5[%c0_13, %c0_14, %c0_15], %17 {strides = array<i32>} : memref<1x8x32xf32, #tpu.memory_space<vmem>>, vector<1x8x32xf32>,
    %c0_16 = arith.constant 0 : index
    %c0_17 = arith.constant 0 : index
    %c0_18 = arith.constant 0 : index
    %19 = vector.load %arg6[%c0_16, %c0_17, %c0_18] : memref<1x8x8xf32, #tpu.memory_space<vmem>>, vector<1x8x8xf32>
    tpu.vector_store %arg6[%c0_16, %c0_17, %c0_18], %16 {strides = array<i32>} : memref<1x8x8xf32, #tpu.memory_space<vmem>>, vector<1x8x8xf32>,
    return
  }
  func.func @transform_0(%arg0: i32, %arg1: i32) -> (i32, i32, i32) {
    %c0_i32 = arith.constant 0 : i32
    %c0_i32_0 = arith.constant 0 : i32
    %c0_i32_1 = arith.constant 0 : i32
    return %arg0, %c0_i32, %c0_i32_0 : i32, i32, i32
  }
  func.func @transform_1(%arg0: i32, %arg1: i32) -> (i32, i32, i32) {
    %c0_i32 = arith.constant 0 : i32
    %c0_i32_0 = arith.constant 0 : i32
    %c0_i32_1 = arith.constant 0 : i32
    return %arg0, %c0_i32, %c0_i32_0 : i32, i32, i32
  }
  func.func @transform_2(%arg0: i32, %arg1: i32) -> (i32, i32, i32) {
    %c0_i32 = arith.constant 0 : i32
    %c0_i32_0 = arith.constant 0 : i32
    return %arg0, %arg1, %c0_i32 : i32, i32, i32
  }
  func.func @transform_3(%arg0: i32, %arg1: i32) -> (i32, i32, i32) {
    %c0_i32 = arith.constant 0 : i32
    %c0_i32_0 = arith.constant 0 : i32
    return %arg0, %arg1, %c0_i32 : i32, i32, i32
  }
  func.func @transform_4(%arg0: i32, %arg1: i32) -> (i32, i32, i32) {
    %c0_i32 = arith.constant 0 : i32
    %c0_i32_0 = arith.constant 0 : i32
    return %arg0, %arg1, %c0_i32 : i32, i32, i32
  }
}

</mosaic_0001>

<llo_original>
// kernel: tpu_custom_call.1
$region0: #{tpu_custom_call.1}
  #allocation0 [shape = 'u32[]', space=smem, size = 0x4, offset = 0x4, fixed_abs, tag = 'smem constant byte address 0x4 - core index']
  #allocation1 [shape = 'u32[72,128]{1,0:T(1,128)}', space=vmem, size = 0x9000, scoped, tag = 'internal scratch']
  %s0 = inlined_call_operand.hbm [shape: f32[2,8,32], index: 0, kind: input, shape index: {}]
  %s1 = inlined_call_operand.hbm [shape: f32[2,8,32], index: 1, kind: input, shape index: {}]
  %s2 = inlined_call_operand.hbm [shape: f32[2,8,32], index: 2, kind: input, shape index: {}]
  %s3 = inlined_call_operand.hbm [shape: f32[2,8,32], index: 3, kind: output, shape index: {0}]
  %s4 = inlined_call_operand.hbm [shape: f32[2,8,8], index: 4, kind: output, shape index: {1}]
  %5 = xla_tuple %s3, %s4
  %s6 = sld [smem:[#allocation0]]
  $region65: #{tpu_custom_call.1} parent=0
    _
  %s8 = ssub.s32 1, %s6
  %s9 = scalar_select 0, %s8, %s6
  $region1: #{tpu_custom_call.1} parent=0
    #allocation2 [shape = 'u8[8192]{0}', space=vmem, size = 0x2000, scoped, tag = 'input window, operand 0']
    #allocation3 [shape = 's32[2]{0}', space=sflag, size = 0x8, scoped, tag = 'scoped memory for tpu_custom_call.1']
    #allocation4 [shape = 's32[2]{0}', space=sflag, size = 0x8, scoped, tag = 'scoped memory for tpu_custom_call.1']
    #allocation5 [shape = 'u8[8192]{0}', space=vmem, size = 0x2000, scoped, tag = 'input window, operand 1']
    #allocation6 [shape = 's32[2]{0}', space=sflag, size = 0x8, scoped, tag = 'scoped memory for tpu_custom_call.1']
    #allocation7 [shape = 'u8[8192]{0}', space=vmem, size = 0x2000, scoped, tag = 'input window, operand 2']
    #allocation8 [shape = 'u8[8192]{0}', space=vmem, size = 0x2000, scoped, tag = 'output window, operand 0']
    #allocation9 [shape = 'u8[8192]{0}', space=vmem, size = 0x2000, scoped, tag = 'output window, operand 1']
    #allocation10 [shape = 's32[2]{0}', space=sflag, size = 0x8, scoped, tag = 'scoped memory for tpu_custom_call.1']
    %10 = vsyncpa [#allocation3], 0
    %s11 = scalar_lea.sflag [#allocation3], 1
    %12 = vsyncpa %s11, 0
    %13 = vsyncpa [#allocation6], 0
    %s14 = scalar_lea.sflag [#allocation6], 1
    %15 = vsyncpa %s14, 0
    %16 = vsyncpa [#allocation4], 0
    %s17 = scalar_lea.sflag [#allocation4], 1
    %18 = vsyncpa %s17, 0
    %19 = vsyncpa [#allocation10], 0
    %s20 = scalar_lea.sflag [#allocation10], 1
    %21 = vsyncpa %s20, 0
    loop: start=0, step=1, limit=4
    $region2: #{tpu_custom_call.1} parent=1 // loop_pre_header
      _
    $region3: #{tpu_custom_call.1} parent=1 // loop_header
      %s23 = sphi 0, %s27
      %p24 = scmp.ge.s32.totalorder %s23, 4
      %s30 = sphi 0, %s42
      %s31 = sphi 0, %s38
      %s32 = sphi 0, %s30
      %s33 = sphi 0, %s31
      %s34 = sphi 0, %s32
      %s35 = sphi 0, %s33
      %s45 = sphi 0, %s47
      %s48 = sphi 0, %s45
      %s49 = sphi 0, %s48
      %s65 = sphi 0, %s49
      %s71 = sphi 0, %s73
      %s74 = sphi 0, %s71
      %s75 = sphi 0, %s74
      %s91 = sphi 0, %s75
      %s99 = sphi 0, %s101
      %s102 = sphi 0, %s99
      %s103 = sphi 0, %s102
      %s119 = sphi 0, %s103
      %s127 = sphi 0, %s129
      %s130 = sphi 0, %s127
      %s131 = sphi 0, %s130
      %s147 = sphi 0, %s131
      %s155 = sphi 0, %s157
      %s158 = sphi 0, %s155
      %s159 = sphi 0, %s158
      %s175 = sphi 0, %s159
    $region4: #{tpu_custom_call.1} parent=1 // loop_header_branch
      %26 = sbr.rel (%p24) target = $region8
    $region5: #{tpu_custom_call.1} parent=1 // loop_body
      %s28 = ssub.s32 %s23, 1
      %s29 = ssub.s32 %s23, 2
      %s36 = sadd.s32 1, %s31
      %p37 = scmp.ge.s32.totalorder %s36, 1
      %s38 = scalar_select %p37, 0, %s36
      %s39 = sadd.s32 1, %s30
      %s40 = scalar_select %p37, %s39, %s30
      %p41 = scmp.ge.s32.totalorder %s40, 2
      %s42 = scalar_select %p41, 0, %s40
      %s43 = ssub.s32 %s30, %s42
      %p44 = scmp.eq.s32.totalorder %s43, 0
      %s46 = sadd.s32 %s45, 1
      %s47 = scalar_select %p44, %s45, %s46
      %p50 = pneg %p44
      %p51 = scmp.eq.s32.totalorder %s23, 1
      %p52 = por %p50, %p51
      %p53 = scmp.ne.s32.totalorder %s45, %s48
      %p54 = scmp.eq.s32.totalorder %s23, 0
      %p55 = por %p53, %p54
      %p56 = scmp.ne.s32.totalorder %s45, %s48
      %p57 = scmp.eq.s32.totalorder %s28, 1
      %p58 = por %p56, %p57
      %p59 = scmp.ne.s32.totalorder %s48, %s49
      %p60 = scmp.eq.s32.totalorder %s28, 0
      %p61 = por %p59, %p60
      %p62 = scmp.ne.s32.totalorder %s48, %s49
      %p63 = scmp.eq.s32.totalorder %s29, 1
      %p64 = por %p62, %p63
      %p66 = scmp.ne.s32.totalorder %s49, %s65
      %p67 = scmp.eq.s32.totalorder %s29, 0
      %p68 = por %p66, %p67
      %s69 = ssub.s32 %s30, %s42
      %p70 = scmp.eq.s32.totalorder %s69, 0
      %s72 = sadd.s32 %s71, 1
      %s73 = scalar_select %p70, %s71, %s72
      %p76 = pneg %p70
      %p77 = scmp.eq.s32.totalorder %s23, 1
      %p78 = por %p76, %p77
      %p79 = scmp.ne.s32.totalorder %s71, %s74
      %p80 = scmp.eq.s32.totalorder %s23, 0
      %p81 = por %p79, %p80
      %p82 = scmp.ne.s32.totalorder %s71, %s74
      %p83 = scmp.eq.s32.totalorder %s28, 1
      %p84 = por %p82, %p83
      %p85 = scmp.ne.s32.totalorder %s74, %s75
      %p86 = scmp.eq.s32.totalorder %s28, 0
      %p87 = por %p85, %p86
      %p88 = scmp.ne.s32.totalorder %s74, %s75
      %p89 = scmp.eq.s32.totalorder %s29, 1
      %p90 = por %p88, %p89
      %p92 = scmp.ne.s32.totalorder %s75, %s91
      %p93 = scmp.eq.s32.totalorder %s29, 0
      %p94 = por %p92, %p93
      %s95 = ssub.s32 %s30, %s42
      %s96 = ssub.s32 %s31, %s38
      %s97 = sor.u32 %s95, %s96
      %p98 = scmp.eq.s32.totalorder %s97, 0
      %s100 = sadd.s32 %s99, 1
      %s101 = scalar_select %p98, %s99, %s100
      %p104 = pneg %p98
      %p105 = scmp.eq.s32.totalorder %s23, 1
      %p106 = por %p104, %p105
      %p107 = scmp.ne.s32.totalorder %s99, %s102
      %p108 = scmp.eq.s32.totalorder %s23, 0
      %p109 = por %p107, %p108
      %p110 = scmp.ne.s32.totalorder %s99, %s102
      %p111 = scmp.eq.s32.totalorder %s28, 1
      %p112 = por %p110, %p111
      %p113 = scmp.ne.s32.totalorder %s102, %s103
      %p114 = scmp.eq.s32.totalorder %s28, 0
      %p115 = por %p113, %p114
      %p116 = scmp.ne.s32.totalorder %s102, %s103
      %p117 = scmp.eq.s32.totalorder %s29, 1
      %p118 = por %p116, %p117
      %p120 = scmp.ne.s32.totalorder %s103, %s119
      %p121 = scmp.eq.s32.totalorder %s29, 0
      %p122 = por %p120, %p121
      %s123 = ssub.s32 %s30, %s42
      %s124 = ssub.s32 %s31, %s38
      %s125 = sor.u32 %s123, %s124
      %p126 = scmp.eq.s32.totalorder %s125, 0
      %s128 = sadd.s32 %s127, 1
      %s129 = scalar_select %p126, %s127, %s128
      %p132 = pneg %p126
      %p133 = scmp.eq.s32.totalorder %s23, 1
      %p134 = por %p132, %p133
      %p135 = scmp.ne.s32.totalorder %s127, %s130
      %p136 = scmp.eq.s32.totalorder %s23, 0
      %p137 = por %p135, %p136
      %p138 = scmp.ne.s32.totalorder %s127, %s130
      %p139 = scmp.eq.s32.totalorder %s28, 1
      %p140 = por %p138, %p139
      %p141 = scmp.ne.s32.totalorder %s130, %s131
      %p142 = scmp.eq.s32.totalorder %s28, 0
      %p143 = por %p141, %p142
      %p144 = scmp.ne.s32.totalorder %s130, %s131
      %p145 = scmp.eq.s32.totalorder %s29, 1
      %p146 = por %p144, %p145
      %p148 = scmp.ne.s32.totalorder %s131, %s147
      %p149 = scmp.eq.s32.totalorder %s29, 0
      %p150 = por %p148, %p149
      %s151 = ssub.s32 %s30, %s42
      %s152 = ssub.s32 %s31, %s38
      %s153 = sor.u32 %s151, %s152
      %p154 = scmp.eq.s32.totalorder %s153, 0
      %s156 = sadd.s32 %s155, 1
      %s157 = scalar_select %p154, %s155, %s156
      %p160 = pneg %p154
      %p161 = scmp.eq.s32.totalorder %s23, 1
      %p162 = por %p160, %p161
      %p163 = scmp.ne.s32.totalorder %s155, %s158
      %p164 = scmp.eq.s32.totalorder %s23, 0
      %p165 = por %p163, %p164
      %p166 = scmp.ne.s32.totalorder %s155, %s158
      %p167 = scmp.eq.s32.totalorder %s28, 1
      %p168 = por %p166, %p167
      %p169 = scmp.ne.s32.totalorder %s158, %s159
      %p170 = scmp.eq.s32.totalorder %s28, 0
      %p171 = por %p169, %p170
      %p172 = scmp.ne.s32.totalorder %s158, %s159
      %p173 = scmp.eq.s32.totalorder %s29, 1
      %p174 = por %p172, %p173
      %p176 = scmp.ne.s32.totalorder %s159, %s175
      %p177 = scmp.eq.s32.totalorder %s29, 0
      %p178 = por %p176, %p177
      %p179 = scmp.le.s32.totalorder 1, %s23
      %p180 = scmp.lt.s32.totalorder %s23, 3
      %p181 = pnand %p179, %p180
      %p182 = pneg %p181
      // Predicated region
      $region9: #{tpu_custom_call.1} parent=5 // pred_check
        _
      $region10: #{tpu_custom_call.1} parent=5 // pred_check_branch
        %184 = sbr.rel (%p181) target = $region12
      $region11: #{tpu_custom_call.1} parent=5 // pred_region
        %s185 = ssub.s32 %s23, 1
      $region12: #{tpu_custom_call.1} parent=5 // pred_fallthru
        _
      %p186 = scmp.lt.s32.totalorder %s23, 2
      // Predicated region
      $region13: #{tpu_custom_call.1} parent=5 // pred_check
        %p187 = pneg %p186
      $region14: #{tpu_custom_call.1} parent=5 // pred_check_branch
        %189 = sbr.rel (%p187) target = $region16
      $region15: #{tpu_custom_call.1} parent=5 // pred_region
        // Predicated region
        $region17: #{tpu_custom_call.1} parent=15 // pred_check
          %p190 = pneg %p55
        $region18: #{tpu_custom_call.1} parent=15 // pred_check_branch
          %192 = sbr.rel (%p190) target = $region20
        $region19: #{tpu_custom_call.1} parent=15 // pred_region
          %s193 = sand.u32 %s45, 1
          %s194 = scalar_lea.sflag [#allocation3], %s193
          %s195 = sand.u32 %s45, 1
          %s196 = smul.addr %s195, 8
          %s197 = scalar_lea.vmem [#allocation2], %s196
          %199 = vsyncadd %s194, 0
          %s200 = smul.addr %s30, 8
          %s201 = scalar_lea.hbm %s0, %s200
          %s203 = sshll.u32 %s201, 4
          %s204 = int_to_ptr.hbm [resolvable:$true] %s203
          %s205 = sshll.u32 %s197, 4
          %s206 = int_to_ptr.vmem [resolvable:$true] %s205
          %208 = dma.hbm_to_vmem [thread:$0]  %s204, 128, %s206, %s194
        $region20: #{tpu_custom_call.1} parent=15 // pred_fallthru
          _
        // Predicated region
        $region21: #{tpu_custom_call.1} parent=15 // pred_check
          %p209 = pneg %p81
        $region22: #{tpu_custom_call.1} parent=15 // pred_check_branch
          %211 = sbr.rel (%p209) target = $region24
        $region23: #{tpu_custom_call.1} parent=15 // pred_region
          %s212 = sand.u32 %s23, 1
          %s213 = scalar_lea.sflag [#allocation6], %s212
          %s214 = sand.u32 %s71, 1
          %s215 = smul.addr %s214, 8
          %s216 = scalar_lea.vmem [#allocation5], %s215
          %218 = vsyncadd %s213, 0
          %s219 = smul.addr %s30, 8
          %s220 = scalar_lea.hbm %s1, %s219
          %s222 = sshll.u32 %s220, 4
          %s223 = int_to_ptr.hbm [resolvable:$true] %s222
          %s224 = sshll.u32 %s216, 4
          %s225 = int_to_ptr.vmem [resolvable:$true] %s224
          %227 = dma.hbm_to_vmem [thread:$0]  %s223, 128, %s225, %s213
        $region24: #{tpu_custom_call.1} parent=15 // pred_fallthru
          _
        // Predicated region
        $region25: #{tpu_custom_call.1} parent=15 // pred_check
          %p228 = pneg %p109
        $region26: #{tpu_custom_call.1} parent=15 // pred_check_branch
          %230 = sbr.rel (%p228) target = $region28
        $region27: #{tpu_custom_call.1} parent=15 // pred_region
          %s231 = sand.u32 %s23, 1
          %s232 = scalar_lea.sflag [#allocation6], %s231
          %s233 = sand.u32 %s99, 1
          %s234 = smul.addr %s233, 8
          %s235 = scalar_lea.vmem [#allocation7], %s234
          %237 = vsyncadd %s232, 0
          %s238 = sadd.s32 %s31, %s30
          %s239 = smul.addr %s238, 8
          %s240 = scalar_lea.hbm %s2, %s239
          %s242 = sshll.u32 %s240, 4
          %s243 = int_to_ptr.hbm [resolvable:$true] %s242
          %s244 = sshll.u32 %s235, 4
          %s245 = int_to_ptr.vmem [resolvable:$true] %s244
          %247 = dma.hbm_to_vmem [thread:$0]  %s243, 128, %s245, %s232
        $region28: #{tpu_custom_call.1} parent=15 // pred_fallthru
          _
      $region16: #{tpu_custom_call.1} parent=5 // pred_fallthru
        _
      %p248 = scmp.le.s32.totalorder 1, %s23
      %p249 = scmp.lt.s32.totalorder %s23, 3
      %p250 = pnand %p248, %p249
      %p251 = pneg %p250
      // Predicated region
      $region29: #{tpu_custom_call.1} parent=5 // pred_check
        _
      $region30: #{tpu_custom_call.1} parent=5 // pred_check_branch
        %253 = sbr.rel (%p250) target = $region32
      $region31: #{tpu_custom_call.1} parent=5 // pred_region
        %s254 = ssub.s32 %s23, 1
        %s255 = sand.u32 %s48, 1
        %s256 = scalar_lea.sflag [#allocation3], %s255
        %s257 = sand.u32 %s48, 1
        %s258 = smul.addr %s257, 8
        %s259 = scalar_lea.vmem [#allocation2], %s258
        // Predicated region
        $region33: #{tpu_custom_call.1} parent=31 // pred_check
          %p260 = pneg %p61
        $region34: #{tpu_custom_call.1} parent=31 // pred_check_branch
          %262 = sbr.rel (%p260) target = $region36
        $region35: #{tpu_custom_call.1} parent=31 // pred_region
          %264 = dma.done %s256, 128
        $region36: #{tpu_custom_call.1} parent=31 // pred_fallthru
          _
        %s265 = sand.u32 %s28, 1
        %s266 = scalar_lea.sflag [#allocation6], %s265
        %s267 = sand.u32 %s74, 1
        %s268 = smul.addr %s267, 8
        %s269 = scalar_lea.vmem [#allocation5], %s268
        // Predicated region
        $region37: #{tpu_custom_call.1} parent=31 // pred_check
          %p270 = pneg %p87
        $region38: #{tpu_custom_call.1} parent=31 // pred_check_branch
          %272 = sbr.rel (%p270) target = $region40
        $region39: #{tpu_custom_call.1} parent=31 // pred_region
          %274 = dma.done %s266, 128
        $region40: #{tpu_custom_call.1} parent=31 // pred_fallthru
          _
        %s275 = sand.u32 %s28, 1
        %s276 = scalar_lea.sflag [#allocation6], %s275
        %s277 = sand.u32 %s102, 1
        %s278 = smul.addr %s277, 8
        %s279 = scalar_lea.vmem [#allocation7], %s278
        // Predicated region
        $region41: #{tpu_custom_call.1} parent=31 // pred_check
          %p280 = pneg %p115
        $region42: #{tpu_custom_call.1} parent=31 // pred_check_branch
          %282 = sbr.rel (%p280) target = $region44
        $region43: #{tpu_custom_call.1} parent=31 // pred_region
          %284 = dma.done %s276, 128
        $region44: #{tpu_custom_call.1} parent=31 // pred_fallthru
          _
        %s285 = sand.u32 %s48, 1
        %s286 = scalar_lea.sflag [#allocation3], %s285
        %s287 = sand.u32 %s48, 1
        %s288 = smul.addr %s287, 8
        %s289 = scalar_lea.vmem [#allocation2], %s288
        %p290 = pneg %p61
        %p291 = pneg %p58
        %s292 = sand.u32 %s28, 1
        %s293 = scalar_lea.sflag [#allocation6], %s292
        %s294 = sand.u32 %s74, 1
        %s295 = smul.addr %s294, 8
        %s296 = scalar_lea.vmem [#allocation5], %s295
        %p297 = pneg %p87
        %p298 = pneg %p84
        %s299 = sand.u32 %s28, 1
        %s300 = scalar_lea.sflag [#allocation6], %s299
        %s301 = sand.u32 %s102, 1
        %s302 = smul.addr %s301, 8
        %s303 = scalar_lea.vmem [#allocation7], %s302
        %p304 = pneg %p115
        %p305 = pneg %p112
        %p306 = pneg %p143
        %p307 = pneg %p140
        %s308 = sand.u32 %s130, 1
        %s309 = scalar_lea.sflag [#allocation4], %s308
        %s310 = sand.u32 %s130, 1
        %s311 = smul.addr %s310, 8
        %s312 = scalar_lea.vmem [#allocation8], %s311
        %p313 = pneg %p171
        %p314 = pneg %p168
        %s315 = sand.u32 %s158, 1
        %s316 = scalar_lea.sflag [#allocation10], %s315
        %s317 = sand.u32 %s158, 1
        %s318 = smul.addr %s317, 8
        %s319 = scalar_lea.vmem [#allocation9], %s318
        %v320 = vld [vmem:[%s279] sm:$0xff]
        %v321 = vmul.f32 %v320, 0.17677669
        %v322 = vld [vmem:[%s259] sm:$0xff]
        %v323 = vld [vmem:[%s269] sm:$0xff]
        %vm324 = vcmask 261120
        %v326 = vsel %vm324, %v321, 0
        %v329 = vsel %vm324, %v322, 0
        %331 = vmatpush.xpose.msra.mxu0 0.0
        %332 = vmatpush.xpose.msra.mxu0 0.0
        %333 = vmatpush.xpose.msra.mxu0 0.0
        %334 = vmatpush.xpose.msra.mxu0 0.0
        %335 = vmatpush.xpose.msra.mxu0 0.0
        %336 = vmatpush.xpose.msra.mxu0 0.0
        %337 = vmatpush.xpose.msra.mxu0 0.0
        %338 = vmatpush.xpose.msra.mxu0 0.0
        %339 = vmatpush.xpose.msra.mxu0 0.0
        %340 = vmatpush.xpose.msra.mxu0 0.0
        %341 = vmatpush.xpose.msra.mxu0 0.0
        %342 = vmatpush.xpose.msra.mxu0 0.0
        %343 = vmatpush.xpose.msra.mxu0 0.0
        %344 = vmatpush.xpose.msra.mxu0 0.0
        %345 = vmatpush.xpose.msra.mxu0 0.0
        %346 = vmatpush.xpose.msra.mxu0 %v329
        %347 = vmatmul.f32.gmra.mxu0 %v326
        %v348 = vpop.f32.mrf.mxu0
        %v349 = vadd.f32 0.0, %v348
        %350 = vdwg.mxu0
        %vm351 = vcmask 64512
        %v352 = vsel %vm351, %v349, -inf
        %353 = vmax.xlane.f32.xlu0 %v352
        %v354 = vpop.xlane.xlu0 %353
        %v355 = vsub.f32 %v349, %v354
        %v356 = vmul.f32 %v355, 1.442695
        %v357 = vpow.pop %v356
        %v358 = vsel %vm351, %v357, 0.0
        %359 = vadd.xlane.f32.xlu0 %v358
        %v360 = vpop.xlane.xlu0 %359
        %v361 = vrcp.pop %v360
        %v362 = vmul.f32 %v360, %v361
        %v363 = vsub.f32 1.0, %v362
        %v364 = vmul.f32 %v361, %v363
        %v365 = vadd.f32 %v361, %v364
        %vm366 = vweird.f32 %v360
        %vm367 = vweird.f32 %v361
        %vm368 = vmor %vm366, %vm367
        %v369 = vsel %vm368, %v361, %v365
        %v370 = vand.u32 2147483647, %v360
        %vm371 = vcmp.eq.f32.partialorder %v370, 8.507059e+37
        %v372 = vand.u32 %v360, 2147483648
        %v373 = vor.u32 1.1754944e-38, %v372
        %v374 = vsel %vm371, %v373, %v369
        %v375 = vmul.f32 1.0, %v374
        %v376 = vmul.f32 %v357, %v375
        %v378 = vsel %vm351, %v376, 0
        %380 = vmatpush.msra.mxu0 0.0
        %381 = vmatpush.msra.mxu0 0.0
        %382 = vmatpush.msra.mxu0 0.0
        %383 = vmatpush.msra.mxu0 0.0
        %384 = vmatpush.msra.mxu0 0.0
        %385 = vmatpush.msra.mxu0 0.0
        %386 = vmatpush.msra.mxu0 0.0
        %387 = vmatpush.msra.mxu0 0.0
        %388 = vmatpush.msra.mxu0 0.0
        %389 = vmatpush.msra.mxu0 0.0
        %390 = vmatpush.msra.mxu0 0.0
        %391 = vmatpush.msra.mxu0 0.0
        %392 = vmatpush.msra.mxu0 0.0
        %393 = vmatpush.msra.mxu0 0.0
        %394 = vmatpush.msra.mxu0 0.0
        %395 = vmatpush.msra.mxu0 %v323
        %396 = vmatmul.f32.gmra.mxu0 %v378
        %v397 = vpop.f32.mrf.mxu0
        %v398 = vadd.f32 0.0, %v397
        %399 = vdwg.mxu0
        %400 = vst.msk [vmem:[%s312] sm:$0xff] %vm324, %v398
        %401 = vst.msk [vmem:[%s319] sm:$0xff] %vm351, %v376
        %s402 = sand.u32 %s130, 1
        %s403 = scalar_lea.sflag [#allocation4], %s402
        %s404 = sand.u32 %s130, 1
        %s405 = smul.addr %s404, 8
        %s406 = scalar_lea.vmem [#allocation8], %s405
        %s407 = sand.u32 %s158, 1
        %s408 = scalar_lea.sflag [#allocation10], %s407
        %s409 = sand.u32 %s158, 1
        %s410 = smul.addr %s409, 8
        %s411 = scalar_lea.vmem [#allocation9], %s410
        // Predicated region
        $region45: #{tpu_custom_call.1} parent=31 // pred_check
          %p412 = pneg %p140
        $region46: #{tpu_custom_call.1} parent=31 // pred_check_branch
          %414 = sbr.rel (%p412) target = $region48
        $region47: #{tpu_custom_call.1} parent=31 // pred_region
          %416 = vsyncadd %s403, 0
          %s417 = sadd.s32 %s33, %s32
          %s418 = smul.addr %s417, 8
          %s419 = scalar_lea.hbm %s3, %s418
          %s421 = sshll.u32 %s406, 4
          %s422 = int_to_ptr.vmem [resolvable:$true] %s421
          %s423 = sshll.u32 %s419, 4
          %s424 = int_to_ptr.hbm [resolvable:$true] %s423
          %426 = dma.vmem_to_hbm [thread:$0]  %s422, 128, %s424, %s403
        $region48: #{tpu_custom_call.1} parent=31 // pred_fallthru
          _
        // Predicated region
        $region49: #{tpu_custom_call.1} parent=31 // pred_check
          %p427 = pneg %p168
        $region50: #{tpu_custom_call.1} parent=31 // pred_check_branch
          %429 = sbr.rel (%p427) target = $region52
        $region51: #{tpu_custom_call.1} parent=31 // pred_region
          %431 = vsyncadd %s408, 0
          %s432 = sadd.s32 %s33, %s32
          %s433 = smul.addr %s432, 8
          %s434 = scalar_lea.hbm %s4, %s433
          %s436 = sshll.u32 %s411, 4
          %s437 = int_to_ptr.vmem [resolvable:$true] %s436
          %s438 = sshll.u32 %s434, 4
          %s439 = int_to_ptr.hbm [resolvable:$true] %s438
          %441 = dma.vmem_to_hbm [thread:$0]  %s437, 128, %s439, %s408
        $region52: #{tpu_custom_call.1} parent=31 // pred_fallthru
          _
      $region32: #{tpu_custom_call.1} parent=5 // pred_fallthru
        _
      %p442 = scmp.le.s32.totalorder 2, %s23
      // Predicated region
      $region53: #{tpu_custom_call.1} parent=5 // pred_check
        %p443 = pneg %p442
      $region54: #{tpu_custom_call.1} parent=5 // pred_check_branch
        %445 = sbr.rel (%p443) target = $region56
      $region55: #{tpu_custom_call.1} parent=5 // pred_region
        %s446 = ssub.s32 %s23, 2
        // Predicated region
        $region57: #{tpu_custom_call.1} parent=55 // pred_check
          %p447 = pneg %p146
        $region58: #{tpu_custom_call.1} parent=55 // pred_check_branch
          %449 = sbr.rel (%p447) target = $region60
        $region59: #{tpu_custom_call.1} parent=55 // pred_region
          %s450 = sand.u32 %s131, 1
          %s451 = scalar_lea.sflag [#allocation4], %s450
          %s452 = sand.u32 %s131, 1
          %s453 = smul.addr %s452, 8
          %s454 = scalar_lea.vmem [#allocation8], %s453
          %456 = dma.done %s451, 128
        $region60: #{tpu_custom_call.1} parent=55 // pred_fallthru
          _
        // Predicated region
        $region61: #{tpu_custom_call.1} parent=55 // pred_check
          %p457 = pneg %p174
        $region62: #{tpu_custom_call.1} parent=55 // pred_check_branch
          %459 = sbr.rel (%p457) target = $region64
        $region63: #{tpu_custom_call.1} parent=55 // pred_region
          %s460 = sand.u32 %s159, 1
          %s461 = scalar_lea.sflag [#allocation10], %s460
          %s462 = sand.u32 %s159, 1
          %s463 = smul.addr %s462, 8
          %s464 = scalar_lea.vmem [#allocation9], %s463
          %466 = dma.done %s461, 128
        $region64: #{tpu_custom_call.1} parent=55 // pred_fallthru
          _
      $region56: #{tpu_custom_call.1} parent=5 // pred_fallthru
        _
    $region6: #{tpu_custom_call.1} parent=1 // loop_footer
      %s27 = sadd.s32 1, %s23
    $region7: #{tpu_custom_call.1} parent=1 // loop_footer_branch
      %22 = sbr.rel target = $region3
    $region8: #{tpu_custom_call.1} parent=1 // loop_exit
      _
    %467 = vsyncpa [#allocation3], 1
    %s468 = scalar_lea.sflag [#allocation3], 1
    %469 = vsyncpa %s468, 1
    %470 = vsyncpa [#allocation6], 1
    %s471 = scalar_lea.sflag [#allocation6], 1
    %472 = vsyncpa %s471, 1
    %473 = vsyncpa [#allocation4], 1
    %s474 = scalar_lea.sflag [#allocation4], 1
    %475 = vsyncpa %s474, 1
    %476 = vsyncpa [#allocation10], 1
    %s477 = scalar_lea.sflag [#allocation10], 1
    %478 = vsyncpa %s477, 1

</llo_original>
